<compile_context>
chip_gen: v7x
topology: tpu7x:2x2x1
jax: 0.10.0
libtpu: 0.0.40
codegen_flags: <defaults>
</compile_context>

<pallas_src>
import math

import jax
import jax.numpy as jnp
from jax.experimental import pallas as pl
from jax.experimental.pallas import tpu as pltpu


def gaussian_mf_kernel(x_ref, c_ref, k_ref, o_ref):
    # x_ref: (N, 1, TB)  -- batch on lanes
    # c_ref: (N, M, 1)   -- per-(n, m) center
    # k_ref: (N, M, 1)   -- per-(n, m) 1/(sqrt(2)*sigma)
    # o_ref: (N, M, TB)  -- lane-dense over batch
    x = x_ref[...].astype(jnp.float32)
    c = c_ref[...]
    k = k_ref[...]
    z = (x - c) * k                      # broadcast: sublane (M) + lane (TB)
    o_ref[...] = jnp.exp(-(z * z)).astype(o_ref.dtype)


def _pick_batch_tile(B, N, M, max_tile):
    """Batch tile: multiple of 128 dividing B (lane constraint), VMEM-capped."""
    if B % 128 != 0:
        return B  # full extent along the lane axis is always legal
    # Keep a double-buffered output tile <= ~8 MiB (safe even on v7x's 64 MiB VMEM).
    vmem_cap_rows = max(128, ((8 * 1024 * 1024) // (4 * N * M)) // 128 * 128)
    tb = min(max_tile, B, vmem_cap_rows)
    tb = max(128, (tb // 128) * 128)
    while B % tb != 0:
        tb -= 128
    return tb


def gaussian_mf(x, centers, sigmas, *, max_batch_tile=2048):
    B, N = x.shape
    N2, M = centers.shape
    assert N == N2 and sigmas.shape == (N, M)

    out_dtype = x.dtype

    # Parameter preprocessing (would be done once and reused across calls).
    c3 = centers.astype(jnp.float32)[:, :, None]                       # (N, M, 1)
    k3 = (1.0 / (math.sqrt(2.0) * sigmas.astype(jnp.float32)))[:, :, None]

    # Batch onto the lane axis: (B, N) -> (N, 1, B)  (layout plumbing, cheap vs output)
    xT = jnp.transpose(x, (1, 0))[:, None, :]

    TB = _pick_batch_tile(B, N, M, max_batch_tile)
    grid = (B // TB,)

    cost = pl.CostEstimate(
        flops=4 * B * N * M,
        transcendentals=B * N * M,
        bytes_accessed=4 * (B * N + 2 * N * M + B * N * M),
    )

    out_nmb = pl.pallas_call(
        gaussian_mf_kernel,
        out_shape=jax.ShapeDtypeStruct((N, M, B), out_dtype),
        grid=grid,
        in_specs=[
            pl.BlockSpec((N, 1, TB), lambda i: (0, 0, i)),   # x, streamed over batch
            pl.BlockSpec((N, M, 1), lambda i: (0, 0, 0)),    # centers (grid-invariant)
            pl.BlockSpec((N, M, 1), lambda i: (0, 0, 0)),    # k = 1/(sqrt(2)*sigma)
        ],
        out_specs=pl.BlockSpec((N, M, TB), lambda i: (0, 0, i)),
        compiler_params=pltpu.CompilerParams(
            dimension_semantics=("parallel",),
        ),
        cost_estimate=cost,
    )(xT, c3, k3)

    # Back to PyTorch layout (B, N, M). Callers that can consume (N, M, B)
    # directly avoid this extra output-sized pass.
    return jnp.transpose(out_nmb, (2, 0, 1))


def gaussian_mf_ref(x, centers, sigmas):
    # Pure-JAX reference matching the PyTorch forward exactly (with the divide).
    xu = x[:, :, None]
    return jnp.exp(-0.5 * ((xu - centers[None]) / sigmas[None]) ** 2)


if __name__ == "__main__":
    key = jax.random.PRNGKey(0)
    k_x, k_c, k_s, k_x2 = jax.random.split(key, 4)

    num_inputs, num_mfs = 6, 4

    centers = jax.random.uniform(k_c, (num_inputs, num_mfs), dtype=jnp.float32)
    sigmas = jax.random.uniform(k_s, (num_inputs, num_mfs), dtype=jnp.float32)
    # Keep sigmas away from ~0 (same inf/NaN hazard exists in the PyTorch module).
    sigmas = sigmas * 0.9 + 0.1

    # Small case (single block, lane axis = full batch).
    batch = 8
    x = jax.random.uniform(k_x, (batch, num_inputs), dtype=jnp.float32)
    out = jax.block_until_ready(gaussian_mf(x, centers, sigmas))
    ref = gaussian_mf_ref(x, centers, sigmas)
    assert out.shape == (batch, num_inputs, num_mfs)
    assert jnp.allclose(out, ref, atol=1e-5, rtol=1e-5), "mismatch vs reference (small)"

    # Larger batch exercising the lane-aligned tiled / pipelined path (grid > 1).
    batch2 = 512
    x2 = jax.random.uniform(k_x2, (batch2, num_inputs), dtype=jnp.float32)
    out2 = jax.block_until_ready(gaussian_mf(x2, centers, sigmas, max_batch_tile=128))
    ref2 = gaussian_mf_ref(x2, centers, sigmas)
    assert out2.shape == (batch2, num_inputs, num_mfs)
    assert jnp.allclose(out2, ref2, atol=1e-5, rtol=1e-5), "mismatch vs reference (tiled)"

    print("KERNEL_OK")
</pallas_src>

<mosaic_0001>
module attributes {stable_mosaic.version = 11 : i64} {
  func.func @gaussian_mf_kernel(%arg0: i32, %arg1: memref<6x1x8xf32, #tpu.memory_space<vmem>>, %arg2: memref<6x4x1xf32, #tpu.memory_space<vmem>>, %arg3: memref<6x4x1xf32, #tpu.memory_space<vmem>>, %arg4: memref<6x4x8xf32, #tpu.memory_space<vmem>>) attributes {dimension_semantics = [#tpu.dimension_semantics<parallel>], iteration_bounds = array<i64: 1>, scalar_prefetch = 0 : i64, scratch_operands = 0 : i64, tpu.core_type = #tpu.core_type<tc>, window_params = [{transform_indices = @transform_0, window_bounds = array<i64: 6, 1, 8>}, {pipeline_mode = #tpu.pipeline_mode<synchronous>, transform_indices = @transform_1, window_bounds = array<i64: 6, 4, 1>}, {pipeline_mode = #tpu.pipeline_mode<synchronous>, transform_indices = @transform_2, window_bounds = array<i64: 6, 4, 1>}, {transform_indices = @transform_3, window_bounds = array<i64: 6, 4, 8>}]} {
    %c0 = arith.constant 0 : index
    %c0_0 = arith.constant 0 : index
    %c0_1 = arith.constant 0 : index
    %0 = vector.load %arg1[%c0, %c0_0, %c0_1] : memref<6x1x8xf32, #tpu.memory_space<vmem>>, vector<6x1x8xf32>
    %c0_2 = arith.constant 0 : index
    %c0_3 = arith.constant 0 : index
    %c0_4 = arith.constant 0 : index
    %1 = vector.load %arg2[%c0_2, %c0_3, %c0_4] : memref<6x4x1xf32, #tpu.memory_space<vmem>>, vector<6x4x1xf32>
    %c0_5 = arith.constant 0 : index
    %c0_6 = arith.constant 0 : index
    %c0_7 = arith.constant 0 : index
    %2 = vector.load %arg3[%c0_5, %c0_6, %c0_7] : memref<6x4x1xf32, #tpu.memory_space<vmem>>, vector<6x4x1xf32>
    %3 = vector.broadcast %0 : vector<6x1x8xf32> to vector<6x4x8xf32>
    %4 = vector.broadcast %1 : vector<6x4x1xf32> to vector<6x4x8xf32>
    %5 = arith.subf %3, %4 : vector<6x4x8xf32>
    %6 = vector.broadcast %2 : vector<6x4x1xf32> to vector<6x4x8xf32>
    %7 = arith.mulf %5, %6 : vector<6x4x8xf32>
    %8 = arith.mulf %7, %7 : vector<6x4x8xf32>
    %cst = arith.constant 0.000000e+00 : f32
    %9 = vector.broadcast %cst : f32 to vector<6x4x8xf32>
    %10 = arith.subf %9, %8 : vector<6x4x8xf32>
    %11 = math.exp %10 : vector<6x4x8xf32>
    %c0_8 = arith.constant 0 : index
    %c0_9 = arith.constant 0 : index
    %c0_10 = arith.constant 0 : index
    %12 = vector.load %arg4[%c0_8, %c0_9, %c0_10] : memref<6x4x8xf32, #tpu.memory_space<vmem>>, vector<6x4x8xf32>
    tpu.vector_store %arg4[%c0_8, %c0_9, %c0_10], %11 {strides = array<i32>} : memref<6x4x8xf32, #tpu.memory_space<vmem>>, vector<6x4x8xf32>,
    return
  }
  func.func @transform_0(%arg0: i32) -> (i32, i32, i32) {
    %c0_i32 = arith.constant 0 : i32
    %c0_i32_0 = arith.constant 0 : i32
    %c0_i32_1 = arith.constant 0 : i32
    return %c0_i32, %c0_i32_0, %arg0 : i32, i32, i32
  }
  func.func @transform_1(%arg0: i32) -> (i32, i32, i32) {
    %c0_i32 = arith.constant 0 : i32
    %c0_i32_0 = arith.constant 0 : i32
    %c0_i32_1 = arith.constant 0 : i32
    %c0_i32_2 = arith.constant 0 : i32
    return %c0_i32, %c0_i32_0, %c0_i32_1 : i32, i32, i32
  }
  func.func @transform_2(%arg0: i32) -> (i32, i32, i32) {
    %c0_i32 = arith.constant 0 : i32
    %c0_i32_0 = arith.constant 0 : i32
    %c0_i32_1 = arith.constant 0 : i32
    %c0_i32_2 = arith.constant 0 : i32
    return %c0_i32, %c0_i32_0, %c0_i32_1 : i32, i32, i32
  }
  func.func @transform_3(%arg0: i32) -> (i32, i32, i32) {
    %c0_i32 = arith.constant 0 : i32
    %c0_i32_0 = arith.constant 0 : i32
    %c0_i32_1 = arith.constant 0 : i32
    return %c0_i32, %c0_i32_0, %arg0 : i32, i32, i32
  }
}

</mosaic_0001>

<llo_original>
// kernel: tpu_custom_call.1
$region0: #{tpu_custom_call.1}
  #allocation0 [shape = 'u32[]', space=smem, size = 0x4, offset = 0x4, fixed_abs, tag = 'smem constant byte address 0x4 - core index']
  #allocation1 [shape = 'u32[144,128]{1,0:T(1,128)}', space=vmem, size = 0x12000, scoped, tag = 'internal scratch']
  %s0 = inlined_call_operand.vmem [shape: f32[6,1,8], index: 0, kind: input, shape index: {}]
  %s1 = inlined_call_operand.vmem [shape: f32[6,4,1], index: 1, kind: input, shape index: {}]
  %s2 = inlined_call_operand.vmem [shape: f32[6,4,1], index: 2, kind: input, shape index: {}]
  %s3 = inlined_call_operand.hbm [shape: f32[6,4,8], index: 3, kind: output, shape index: {}]
  %s4 = sld [smem:[#allocation0]]
  $region22: #{tpu_custom_call.1} parent=0
    _
  %s6 = ssub.s32 1, %s4
  %s7 = scalar_select 0, %s6, %s4
  $region1: #{tpu_custom_call.1} parent=0
    #allocation2 [shape = 'u8[12288]{0}', space=vmem, size = 0x3000, scoped, tag = 'output window, operand 0, single buffered']
    #allocation3 [shape = 's32[1]{0}', space=sflag, size = 0x4, scoped, tag = 'scoped memory for tpu_custom_call.1']
    %8 = vsyncpa [#allocation3], 0
    // Predicated region
    $region2: #{tpu_custom_call.1} parent=1 // pred_check
      _
    $region3: #{tpu_custom_call.1} parent=1 // pred_check_branch
      %10 = sbr.rel (0) target = $region5
    $region4: #{tpu_custom_call.1} parent=1 // pred_region
      _
    $region5: #{tpu_custom_call.1} parent=1 // pred_fallthru
      _
    // Predicated region
    $region6: #{tpu_custom_call.1} parent=1 // pred_check
      _
    $region7: #{tpu_custom_call.1} parent=1 // pred_check_branch
      %12 = sbr.rel (0) target = $region9
    $region8: #{tpu_custom_call.1} parent=1 // pred_region
      _
    $region9: #{tpu_custom_call.1} parent=1 // pred_fallthru
      _
    // Predicated region
    $region10: #{tpu_custom_call.1} parent=1 // pred_check
      _
    $region11: #{tpu_custom_call.1} parent=1 // pred_check_branch
      %14 = sbr.rel (0) target = $region13
    $region12: #{tpu_custom_call.1} parent=1 // pred_region
      _
    $region13: #{tpu_custom_call.1} parent=1 // pred_fallthru
      _
    %v15 = vld [vmem:[%s0] sm:$0x1]
    %v16 = vld [vmem:[%s0 + $0x1] sm:$0x1]
    %v17 = vld [vmem:[%s0 + $0x2] sm:$0x1]
    %v18 = vld [vmem:[%s0 + $0x3] sm:$0x1]
    %v19 = vld [vmem:[%s0 + $0x4] sm:$0x1]
    %v20 = vld [vmem:[%s0 + $0x5] sm:$0x1]
    %v21 = vld [vmem:[%s1] sm:$0xf]
    %v22 = vld [vmem:[%s1 + $0x4] sm:$0xf]
    %v23 = vld [vmem:[%s1 + $0x8] sm:$0xf]
    %v24 = vld [vmem:[%s1 + $0xc] sm:$0xf]
    %v25 = vld [vmem:[%s1 + $0x10] sm:$0xf]
    %v26 = vld [vmem:[%s1 + $0x14] sm:$0xf]
    %v27 = vld [vmem:[%s2] sm:$0xf]
    %v28 = vld [vmem:[%s2 + $0x4] sm:$0xf]
    %v29 = vld [vmem:[%s2 + $0x8] sm:$0xf]
    %v30 = vld [vmem:[%s2 + $0xc] sm:$0xf]
    %v31 = vld [vmem:[%s2 + $0x10] sm:$0xf]
    %v32 = vld [vmem:[%s2 + $0x14] sm:$0xf]
    %v39 = vlaneseq
    %v40 = vshrl.u32 %v39, 7
    %v41 = vsub.s32 0, %v40
    %v42 = vrot.slane %v15, %v41
    %v43 = vlaneseq
    %v44 = vshrl.u32 %v43, 7
    %v45 = vsub.s32 0, %v44
    %v46 = vrot.slane %v16, %v45
    %v47 = vlaneseq
    %v48 = vshrl.u32 %v47, 7
    %v49 = vsub.s32 0, %v48
    %v50 = vrot.slane %v17, %v49
    %v51 = vlaneseq
    %v52 = vshrl.u32 %v51, 7
    %v53 = vsub.s32 0, %v52
    %v54 = vrot.slane %v18, %v53
    %v55 = vlaneseq
    %v56 = vshrl.u32 %v55, 7
    %v57 = vsub.s32 0, %v56
    %v58 = vrot.slane %v19, %v57
    %v59 = vlaneseq
    %v60 = vshrl.u32 %v59, 7
    %v61 = vsub.s32 0, %v60
    %v62 = vrot.slane %v20, %v61
    %70 = vset.pattern.permute.xlu0 0
    %71 = vperm.xlu0 %70, %v21
    %v72 = vpop.permute.xlu0 %71
    %75 = vset.pattern.permute.xlu0 0
    %76 = vperm.xlu0 %75, %v22
    %v77 = vpop.permute.xlu0 %76
    %80 = vset.pattern.permute.xlu0 0
    %81 = vperm.xlu0 %80, %v23
    %v82 = vpop.permute.xlu0 %81
    %85 = vset.pattern.permute.xlu0 0
    %86 = vperm.xlu0 %85, %v24
    %v87 = vpop.permute.xlu0 %86
    %90 = vset.pattern.permute.xlu0 0
    %91 = vperm.xlu0 %90, %v25
    %v92 = vpop.permute.xlu0 %91
    %95 = vset.pattern.permute.xlu0 0
    %96 = vperm.xlu0 %95, %v26
    %v97 = vpop.permute.xlu0 %96
    %v99 = vsub.f32 %v42, %v72
    %v100 = vsub.f32 %v46, %v77
    %v101 = vsub.f32 %v50, %v82
    %v102 = vsub.f32 %v54, %v87
    %v103 = vsub.f32 %v58, %v92
    %v104 = vsub.f32 %v62, %v97
    %106 = vset.pattern.permute.xlu0 0
    %107 = vperm.xlu0 %106, %v27
    %v108 = vpop.permute.xlu0 %107
    %111 = vset.pattern.permute.xlu0 0
    %112 = vperm.xlu0 %111, %v28
    %v113 = vpop.permute.xlu0 %112
    %116 = vset.pattern.permute.xlu0 0
    %117 = vperm.xlu0 %116, %v29
    %v118 = vpop.permute.xlu0 %117
    %121 = vset.pattern.permute.xlu0 0
    %122 = vperm.xlu0 %121, %v30
    %v123 = vpop.permute.xlu0 %122
    %126 = vset.pattern.permute.xlu0 0
    %127 = vperm.xlu0 %126, %v31
    %v128 = vpop.permute.xlu0 %127
    %131 = vset.pattern.permute.xlu0 0
    %132 = vperm.xlu0 %131, %v32
    %v133 = vpop.permute.xlu0 %132
    %v135 = vmul.f32 %v99, %v108
    %v136 = vmul.f32 %v100, %v113
    %v137 = vmul.f32 %v101, %v118
    %v138 = vmul.f32 %v102, %v123
    %v139 = vmul.f32 %v103, %v128
    %v140 = vmul.f32 %v104, %v133
    %v141 = vmul.f32 %v135, %v135
    %v142 = vmul.f32 %v136, %v136
    %v143 = vmul.f32 %v137, %v137
    %v144 = vmul.f32 %v138, %v138
    %v145 = vmul.f32 %v139, %v139
    %v146 = vmul.f32 %v140, %v140
    %v147 = vsub.f32 0.0, %v141
    %v148 = vsub.f32 0.0, %v142
    %v149 = vsub.f32 0.0, %v143
    %v150 = vsub.f32 0.0, %v144
    %v151 = vsub.f32 0.0, %v145
    %v152 = vsub.f32 0.0, %v146
    %v153 = vmul.f32 %v147, 1.442695
    %v154 = vpow.pop %v153
    %v155 = vmul.f32 %v148, 1.442695
    %v156 = vpow.pop %v155
    %v157 = vmul.f32 %v149, 1.442695
    %v158 = vpow.pop %v157
    %v159 = vmul.f32 %v150, 1.442695
    %v160 = vpow.pop %v159
    %v161 = vmul.f32 %v151, 1.442695
    %v162 = vpow.pop %v161
    %v163 = vmul.f32 %v152, 1.442695
    %v164 = vpow.pop %v163
    %vm165 = vcmask 60416
    %166 = vst.msk [vmem:[#allocation2] sm:$0xf] %vm165, %v154
    %167 = vst.msk [vmem:[#allocation2 + $0x4] sm:$0xf] %vm165, %v156
    %168 = vst.msk [vmem:[#allocation2 + $0x8] sm:$0xf] %vm165, %v158
    %169 = vst.msk [vmem:[#allocation2 + $0xc] sm:$0xf] %vm165, %v160
    %170 = vst.msk [vmem:[#allocation2 + $0x10] sm:$0xf] %vm165, %v162
    %171 = vst.msk [vmem:[#allocation2 + $0x14] sm:$0xf] %vm165, %v164
    // Predicated region
    $region14: #{tpu_custom_call.1} parent=1 // pred_check
      _
    $region15: #{tpu_custom_call.1} parent=1 // pred_check_branch
      %173 = sbr.rel (0) target = $region17
    $region16: #{tpu_custom_call.1} parent=1 // pred_region
      %s175 = ssub.s32 384, 384
      %176 = vsyncadd [#allocation3], %s175
      %s177 = sshll.u32 [#allocation2], 4
      %s178 = int_to_ptr.vmem [resolvable:$true] %s177
      %183 = dma.vmem_to_hbm [thread:$0]  %s178, 384, %s3, [#allocation3], 64, 64, 4
    $region17: #{tpu_custom_call.1} parent=1 // pred_fallthru
      _
    // Predicated region
    $region18: #{tpu_custom_call.1} parent=1 // pred_check
      _
    $region19: #{tpu_custom_call.1} parent=1 // pred_check_branch
      %185 = sbr.rel (0) target = $region21
    $region20: #{tpu_custom_call.1} parent=1 // pred_region
      %186 = dma.done [#allocation3], 384
    $region21: #{tpu_custom_call.1} parent=1 // pred_fallthru
      _
    %187 = vsyncpa [#allocation3], 1

</llo_original>
